<compile_context>
chip_gen: v6e
topology: v6e:2x2x1
jax: 0.10.0
libtpu: 0.0.40
codegen_flags: <defaults>
</compile_context>

<pallas_src>
import functools

import jax
import jax.numpy as jnp
from jax.experimental import pallas as pl
from jax.experimental.pallas import tpu as pltpu


# Lane-aligned padded widths for the 150 / 75 / 50 hidden layers.
_H1, _H2, _H3 = 256, 128, 128
_LANE = 128
_SUBLANE = 8


def _round_up(x, m):
    return ((x + m - 1) // m) * m


def _pad2d(a, rows, cols):
    return jnp.pad(a, ((0, rows - a.shape[0]), (0, cols - a.shape[1])))


def _actor_kernel(matmul_dtype, ah_ref, s_ref, w1_ref, b1_ref, w2_ref, b2_ref,
                  w3_ref, b3_ref, w4_ref, b4_ref, out_ref):
    """One batch tile of the 4-layer MLP.

    Weights arrive pre-cast to `matmul_dtype`; biases, ReLU, sigmoid and the
    matmul accumulation are f32.  All weight/output widths are lane-aligned.
    """
    ah = ah_ref[0, 0]                                        # SMEM scalar
    x = s_ref[...].astype(matmul_dtype)                      # (tb, state_dim)

    h1 = jnp.dot(x, w1_ref[...], preferred_element_type=jnp.float32)
    h1 = jnp.maximum(h1 + b1_ref[...], 0.0)                  # (tb, 256) f32

    h2 = jnp.dot(h1.astype(matmul_dtype), w2_ref[...],
                 preferred_element_type=jnp.float32)
    h2 = jnp.maximum(h2 + b2_ref[...], 0.0)                  # (tb, 128) f32

    h3 = jnp.dot(h2.astype(matmul_dtype), w3_ref[...],
                 preferred_element_type=jnp.float32)
    h3 = jnp.maximum(h3 + b3_ref[...], 0.0)                  # (tb, 128) f32

    z4 = jnp.dot(h3.astype(matmul_dtype), w4_ref[...],
                 preferred_element_type=jnp.float32) + b4_ref[...]  # (tb, a_pad)

    out_ref[...] = (jax.nn.sigmoid(z4) * ah).astype(out_ref.dtype)


def actor_forward(state, params, action_high, *, batch_tile=512,
                  matmul_dtype=jnp.bfloat16):
    """state: (batch, state_dim) f32.
    params: dict of transposed weights (in, out) and (1, out) biases (f32).
    action_high: python float / 0-d array (scalar action bound).
    matmul_dtype: jnp.bfloat16 (fast MXU path, default) or jnp.float32 (exact).
    """
    batch, state_dim = state.shape
    action_dim = params["w4"].shape[1]
    a_pad = _round_up(action_dim, _LANE)

    # Batch tile: multiple of 8, capped by batch_tile, and chosen so the grid
    # has >= 2 steps whenever the batch allows (keeps both v7x TCs busy).
    tb = _round_up(max(-(-batch // 2), 1), _SUBLANE)
    tb = min(tb, _round_up(batch_tile, _SUBLANE))
    b_pad = _round_up(batch, tb)
    grid = (b_pad // tb,)

    # State keeps its natural feature width; only the batch dim is padded.
    s_p = _pad2d(state, b_pad, state_dim)

    # Weights: pad out-features to lane multiples, pre-cast to matmul_dtype
    # once here (halves weight DMA + resident VMEM on the bf16 path).  Zero
    # padding is exact through matmul/ReLU.  Biases stay f32.
    mm = matmul_dtype
    w1 = _pad2d(params["w1"], state_dim, _H1).astype(mm)
    w2 = _pad2d(params["w2"], _H1, _H2).astype(mm)
    w3 = _pad2d(params["w3"], _H2, _H3).astype(mm)
    w4 = _pad2d(params["w4"], _H3, a_pad).astype(mm)
    b1 = _pad2d(params["b1"], 1, _H1)
    b2 = _pad2d(params["b2"], 1, _H2)
    b3 = _pad2d(params["b3"], 1, _H3)
    b4 = _pad2d(params["b4"], 1, a_pad)
    ah = jnp.asarray(action_high, jnp.float32).reshape(1, 1)

    # Constant index_maps -> weight/bias blocks stay resident across the grid.
    in_specs = [
        pl.BlockSpec(memory_space=pltpu.MemorySpace.SMEM),       # action_high
        pl.BlockSpec((tb, state_dim), lambda i: (i, 0)),         # state tile
        pl.BlockSpec((state_dim, _H1), lambda i: (0, 0)),        # w1 (resident)
        pl.BlockSpec((1, _H1), lambda i: (0, 0)),                # b1
        pl.BlockSpec((_H1, _H2), lambda i: (0, 0)),              # w2
        pl.BlockSpec((1, _H2), lambda i: (0, 0)),                # b2
        pl.BlockSpec((_H2, _H3), lambda i: (0, 0)),              # w3
        pl.BlockSpec((1, _H3), lambda i: (0, 0)),                # b3
        pl.BlockSpec((_H3, a_pad), lambda i: (0, 0)),            # w4
        pl.BlockSpec((1, a_pad), lambda i: (0, 0)),              # b4
    ]
    out_specs = pl.BlockSpec((tb, a_pad), lambda i: (i, 0))

    # VMEM footprint is ~1-2 MB at the default tile; only very large tiles
    # need a raised scoped-VMEM limit (v5e default is 16 MiB).
    itm = jnp.dtype(mm).itemsize
    est_vmem = (2 * tb * (state_dim * 4 + a_pad * 4)                     # io (dbl-buffered)
                + 2 * itm * (state_dim * _H1 + _H1 * _H2 + _H2 * _H3 + _H3 * a_pad)
                + 4 * tb * (_H1 + _H2 + _H3 + a_pad))                    # intermediates
    vmem_limit = (int(min(2 * est_vmem, 100 * 2 ** 20))
                  if est_vmem > 12 * 2 ** 20 else None)

    out_padded = pl.pallas_call(
        functools.partial(_actor_kernel, mm),
        out_shape=jax.ShapeDtypeStruct((b_pad, a_pad), jnp.float32),
        grid=grid,
        in_specs=in_specs,
        out_specs=out_specs,
        compiler_params=pltpu.CompilerParams(
            dimension_semantics=("parallel",),
            vmem_limit_bytes=vmem_limit),
    )(ah, s_p, w1, b1, w2, b2, w3, b3, w4, b4)

    # TODO(synk): for very large training batches, repack the output lane-dense
    # (64 action pairs per 128-lane row) instead of padding action_dim -> 128.
    return out_padded[:batch, :action_dim]


def init_actor_params(key, state_dim, action_dim):
    """PyTorch-like nn.Linear init (U[-1/sqrt(fan_in), 1/sqrt(fan_in)]).

    Weights are stored transposed: (in_features, out_features)."""
    dims = [(state_dim, 150), (150, 75), (75, 50), (50, action_dim)]
    params = {}
    for i, (fan_in, fan_out) in enumerate(dims, start=1):
        key, kw, kb = jax.random.split(key, 3)
        bound = 1.0 / jnp.sqrt(jnp.float32(fan_in))
        params[f"w{i}"] = jax.random.uniform(
            kw, (fan_in, fan_out), jnp.float32, minval=-bound, maxval=bound)
        params[f"b{i}"] = jax.random.uniform(
            kb, (1, fan_out), jnp.float32, minval=-bound, maxval=bound)
    return params


def actor_reference(state, params, action_high):
    """Pure-JAX reference for correctness check."""
    x = jnp.maximum(state @ params["w1"] + params["b1"], 0.0)
    x = jnp.maximum(x @ params["w2"] + params["b2"], 0.0)
    x = jnp.maximum(x @ params["w3"] + params["b3"], 0.0)
    return jax.nn.sigmoid(x @ params["w4"] + params["b4"]) * action_high


if __name__ == "__main__":
    key = jax.random.PRNGKey(0)
    state_dim, action_dim = 8, 2
    action_high = 2.5

    kp, ks1, ks2 = jax.random.split(key, 3)
    params = init_actor_params(kp, state_dim, action_dim)

    # Small inference-style batch, exact f32 MXU path.
    state_small = jax.random.normal(ks1, (2, state_dim), jnp.float32)
    out_small = jax.block_until_ready(
        actor_forward(state_small, params, action_high,
                      matmul_dtype=jnp.float32))
    ref_small = actor_reference(state_small, params, action_high)
    assert out_small.shape == (2, action_dim)
    assert jnp.allclose(out_small, ref_small, atol=2e-5, rtol=1e-5)

    # Larger batch exercising a multi-step batch grid, exact f32 path.
    state_big = jax.random.normal(ks2, (300, state_dim), jnp.float32)
    ref_big = actor_reference(state_big, params, action_high)
    out_big_f32 = jax.block_until_ready(
        actor_forward(state_big, params, action_high, batch_tile=128,
                      matmul_dtype=jnp.float32))
    assert out_big_f32.shape == (300, action_dim)
    assert jnp.allclose(out_big_f32, ref_big, atol=2e-5, rtol=1e-5)

    # Default fast path: bf16 MXU inputs, f32 accumulate (looser tolerance).
    out_big_bf16 = jax.block_until_ready(
        actor_forward(state_big, params, action_high))
    assert out_big_bf16.shape == (300, action_dim)
    assert jnp.allclose(out_big_bf16, ref_big, atol=5e-2, rtol=0.0)

    print("KERNEL_OK")
</pallas_src>

<mosaic_0001>
module attributes {stable_mosaic.version = 11 : i64} {
  func.func @_actor_kernel(%arg0: i32, %arg1: memref<1x1xf32, #tpu.memory_space<smem>>, %arg2: memref<8x8xf32, #tpu.memory_space<vmem>>, %arg3: memref<8x256xf32, #tpu.memory_space<vmem>>, %arg4: memref<1x256xf32, #tpu.memory_space<vmem>>, %arg5: memref<256x128xf32, #tpu.memory_space<vmem>>, %arg6: memref<1x128xf32, #tpu.memory_space<vmem>>, %arg7: memref<128x128xf32, #tpu.memory_space<vmem>>, %arg8: memref<1x128xf32, #tpu.memory_space<vmem>>, %arg9: memref<128x128xf32, #tpu.memory_space<vmem>>, %arg10: memref<1x128xf32, #tpu.memory_space<vmem>>, %arg11: memref<8x128xf32, #tpu.memory_space<vmem>>) attributes {dimension_semantics = [#tpu.dimension_semantics<parallel>], iteration_bounds = array<i64: 1>, scalar_prefetch = 0 : i64, scratch_operands = 0 : i64, tpu.core_type = #tpu.core_type<tc>, window_params = [{transform_indices = @transform_0, window_bounds = array<i64: 1, 1>}, {transform_indices = @transform_1, window_bounds = array<i64: 8, 8>}, {pipeline_mode = #tpu.pipeline_mode<synchronous>, transform_indices = @transform_2, window_bounds = array<i64: 8, 256>}, {pipeline_mode = #tpu.pipeline_mode<synchronous>, transform_indices = @transform_3, window_bounds = array<i64: 1, 256>}, {pipeline_mode = #tpu.pipeline_mode<synchronous>, transform_indices = @transform_4, window_bounds = array<i64: 256, 128>}, {pipeline_mode = #tpu.pipeline_mode<synchronous>, transform_indices = @transform_5, window_bounds = array<i64: 1, 128>}, {pipeline_mode = #tpu.pipeline_mode<synchronous>, transform_indices = @transform_6, window_bounds = array<i64: 128, 128>}, {pipeline_mode = #tpu.pipeline_mode<synchronous>, transform_indices = @transform_7, window_bounds = array<i64: 1, 128>}, {pipeline_mode = #tpu.pipeline_mode<synchronous>, transform_indices = @transform_8, window_bounds = array<i64: 128, 128>}, {pipeline_mode = #tpu.pipeline_mode<synchronous>, transform_indices = @transform_9, window_bounds = array<i64: 1, 128>}, {transform_indices = @transform_10, window_bounds = array<i64: 8, 128>}]} {
    %c0 = arith.constant 0 : index
    %c0_0 = arith.constant 0 : index
    %0 = memref.load %arg1[%c0, %c0_0] : memref<1x1xf32, #tpu.memory_space<smem>>
    %c0_1 = arith.constant 0 : index
    %c0_2 = arith.constant 0 : index
    %1 = vector.load %arg2[%c0_1, %c0_2] : memref<8x8xf32, #tpu.memory_space<vmem>>, vector<8x8xf32>
    %c0_3 = arith.constant 0 : index
    %c0_4 = arith.constant 0 : index
    %2 = vector.load %arg3[%c0_3, %c0_4] : memref<8x256xf32, #tpu.memory_space<vmem>>, vector<8x256xf32>
    %cst = arith.constant dense<0.000000e+00> : vector<8x256xf32>
    %3 = tpu.matmul %1, %2, %cst {dimension_numbers = #tpu.dot_dimension_numbers<[1], [0], [0], [1], [0, 0, 1, 1], [], []>} : vector<8x8xf32>, vector<8x256xf32>, vector<8x256xf32> -> vector<8x256xf32>
    %c0_5 = arith.constant 0 : index
    %c0_6 = arith.constant 0 : index
    %4 = vector.load %arg4[%c0_5, %c0_6] : memref<1x256xf32, #tpu.memory_space<vmem>>, vector<1x256xf32>
    %5 = vector.broadcast %4 : vector<1x256xf32> to vector<8x256xf32>
    %6 = arith.addf %3, %5 : vector<8x256xf32>
    %cst_7 = arith.constant 0.000000e+00 : f32
    %7 = vector.broadcast %cst_7 : f32 to vector<8x256xf32>
    %8 = arith.maximumf %6, %7 : vector<8x256xf32>
    %c0_8 = arith.constant 0 : index
    %c0_9 = arith.constant 0 : index
    %9 = vector.load %arg5[%c0_8, %c0_9] : memref<256x128xf32, #tpu.memory_space<vmem>>, vector<256x128xf32>
    %cst_10 = arith.constant dense<0.000000e+00> : vector<8x128xf32>
    %10 = tpu.matmul %8, %9, %cst_10 {dimension_numbers = #tpu.dot_dimension_numbers<[1], [0], [0], [1], [0, 0, 1, 1], [], []>} : vector<8x256xf32>, vector<256x128xf32>, vector<8x128xf32> -> vector<8x128xf32>
    %c0_11 = arith.constant 0 : index
    %c0_12 = arith.constant 0 : index
    %11 = vector.load %arg6[%c0_11, %c0_12] : memref<1x128xf32, #tpu.memory_space<vmem>>, vector<1x128xf32>
    %12 = vector.broadcast %11 : vector<1x128xf32> to vector<8x128xf32>
    %13 = arith.addf %10, %12 : vector<8x128xf32>
    %cst_13 = arith.constant 0.000000e+00 : f32
    %14 = vector.broadcast %cst_13 : f32 to vector<8x128xf32>
    %15 = arith.maximumf %13, %14 : vector<8x128xf32>
    %c0_14 = arith.constant 0 : index
    %c0_15 = arith.constant 0 : index
    %16 = vector.load %arg7[%c0_14, %c0_15] : memref<128x128xf32, #tpu.memory_space<vmem>>, vector<128x128xf32>
    %cst_16 = arith.constant dense<0.000000e+00> : vector<8x128xf32>
    %17 = tpu.matmul %15, %16, %cst_16 {dimension_numbers = #tpu.dot_dimension_numbers<[1], [0], [0], [1], [0, 0, 1, 1], [], []>} : vector<8x128xf32>, vector<128x128xf32>, vector<8x128xf32> -> vector<8x128xf32>
    %c0_17 = arith.constant 0 : index
    %c0_18 = arith.constant 0 : index
    %18 = vector.load %arg8[%c0_17, %c0_18] : memref<1x128xf32, #tpu.memory_space<vmem>>, vector<1x128xf32>
    %19 = vector.broadcast %18 : vector<1x128xf32> to vector<8x128xf32>
    %20 = arith.addf %17, %19 : vector<8x128xf32>
    %cst_19 = arith.constant 0.000000e+00 : f32
    %21 = vector.broadcast %cst_19 : f32 to vector<8x128xf32>
    %22 = arith.maximumf %20, %21 : vector<8x128xf32>
    %c0_20 = arith.constant 0 : index
    %c0_21 = arith.constant 0 : index
    %23 = vector.load %arg9[%c0_20, %c0_21] : memref<128x128xf32, #tpu.memory_space<vmem>>, vector<128x128xf32>
    %cst_22 = arith.constant dense<0.000000e+00> : vector<8x128xf32>
    %24 = tpu.matmul %22, %23, %cst_22 {dimension_numbers = #tpu.dot_dimension_numbers<[1], [0], [0], [1], [0, 0, 1, 1], [], []>} : vector<8x128xf32>, vector<128x128xf32>, vector<8x128xf32> -> vector<8x128xf32>
    %c0_23 = arith.constant 0 : index
    %c0_24 = arith.constant 0 : index
    %25 = vector.load %arg10[%c0_23, %c0_24] : memref<1x128xf32, #tpu.memory_space<vmem>>, vector<1x128xf32>
    %26 = vector.broadcast %25 : vector<1x128xf32> to vector<8x128xf32>
    %27 = arith.addf %24, %26 : vector<8x128xf32>
    %28 = arith.negf %27 : vector<8x128xf32>
    %29 = math.exp %28 : vector<8x128xf32>
    %cst_25 = arith.constant 1.000000e+00 : f32
    %30 = vector.broadcast %cst_25 : f32 to vector<8x128xf32>
    %31 = arith.addf %30, %29 : vector<8x128xf32>
    %32 = arith.divf %30, %31 : vector<8x128xf32>
    %33 = vector.broadcast %0 : f32 to vector<8x128xf32>
    %34 = arith.mulf %32, %33 : vector<8x128xf32>
    %c0_26 = arith.constant 0 : index
    %c0_27 = arith.constant 0 : index
    %35 = vector.load %arg11[%c0_26, %c0_27] : memref<8x128xf32, #tpu.memory_space<vmem>>, vector<8x128xf32>
    tpu.vector_store %arg11[%c0_26, %c0_27], %34 {strides = array<i32>} : memref<8x128xf32, #tpu.memory_space<vmem>>, vector<8x128xf32>,
    return
  }
  func.func @transform_0(%arg0: i32) -> (i32, i32) {
    %c0_i32 = arith.constant 0 : i32
    %c0_i32_0 = arith.constant 0 : i32
    %c0_i32_1 = arith.constant 0 : i32
    return %c0_i32, %c0_i32_0 : i32, i32
  }
  func.func @transform_1(%arg0: i32) -> (i32, i32) {
    %c0_i32 = arith.constant 0 : i32
    %c0_i32_0 = arith.constant 0 : i32
    return %arg0, %c0_i32 : i32, i32
  }
  func.func @transform_2(%arg0: i32) -> (i32, i32) {
    %c0_i32 = arith.constant 0 : i32
    %c0_i32_0 = arith.constant 0 : i32
    %c0_i32_1 = arith.constant 0 : i32
    return %c0_i32, %c0_i32_0 : i32, i32
  }
  func.func @transform_3(%arg0: i32) -> (i32, i32) {
    %c0_i32 = arith.constant 0 : i32
    %c0_i32_0 = arith.constant 0 : i32
    %c0_i32_1 = arith.constant 0 : i32
    return %c0_i32, %c0_i32_0 : i32, i32
  }
  func.func @transform_4(%arg0: i32) -> (i32, i32) {
    %c0_i32 = arith.constant 0 : i32
    %c0_i32_0 = arith.constant 0 : i32
    %c0_i32_1 = arith.constant 0 : i32
    return %c0_i32, %c0_i32_0 : i32, i32
  }
  func.func @transform_5(%arg0: i32) -> (i32, i32) {
    %c0_i32 = arith.constant 0 : i32
    %c0_i32_0 = arith.constant 0 : i32
    %c0_i32_1 = arith.constant 0 : i32
    return %c0_i32, %c0_i32_0 : i32, i32
  }
  func.func @transform_6(%arg0: i32) -> (i32, i32) {
    %c0_i32 = arith.constant 0 : i32
    %c0_i32_0 = arith.constant 0 : i32
    %c0_i32_1 = arith.constant 0 : i32
    return %c0_i32, %c0_i32_0 : i32, i32
  }
  func.func @transform_7(%arg0: i32) -> (i32, i32) {
    %c0_i32 = arith.constant 0 : i32
    %c0_i32_0 = arith.constant 0 : i32
    %c0_i32_1 = arith.constant 0 : i32
    return %c0_i32, %c0_i32_0 : i32, i32
  }
  func.func @transform_8(%arg0: i32) -> (i32, i32) {
    %c0_i32 = arith.constant 0 : i32
    %c0_i32_0 = arith.constant 0 : i32
    %c0_i32_1 = arith.constant 0 : i32
    return %c0_i32, %c0_i32_0 : i32, i32
  }
  func.func @transform_9(%arg0: i32) -> (i32, i32) {
    %c0_i32 = arith.constant 0 : i32
    %c0_i32_0 = arith.constant 0 : i32
    %c0_i32_1 = arith.constant 0 : i32
    return %c0_i32, %c0_i32_0 : i32, i32
  }
  func.func @transform_10(%arg0: i32) -> (i32, i32) {
    %c0_i32 = arith.constant 0 : i32
    %c0_i32_0 = arith.constant 0 : i32
    return %arg0, %c0_i32 : i32, i32
  }
}

</mosaic_0001>

<llo_original>
// kernel: tpu_custom_call.1
$region0: #{tpu_custom_call.1}
  #allocation0 [shape = 'u32[]', space=smem, size = 0x4, offset = 0x4, fixed_abs, tag = 'smem constant byte address 0x4 - core index']
  #allocation1 [shape = 'u32[144,128]{1,0:T(1,128)}', space=vmem, size = 0x12000, scoped, tag = 'internal scratch']
  #allocation2 [shape = 'f32[1,1]{1,0:T(1,128)S(6)}', space=smem, size = 0x200, scoped, tag = 'scoped memory for tpu_custom_call.1']
  %s0 = inlined_call_operand.<no memory space> [shape: f32[1,1], index: 0, kind: input, shape index: {}]
  %s1 = inlined_call_operand.hbm [shape: f32[8,8], index: 1, kind: input, shape index: {}]
  %s2 = inlined_call_operand.hbm [shape: f32[8,256], index: 2, kind: input, shape index: {}]
  %s3 = inlined_call_operand.vmem [shape: f32[1,256], index: 3, kind: input, shape index: {}]
  %s4 = inlined_call_operand.hbm [shape: f32[256,128], index: 4, kind: input, shape index: {}]
  %s5 = inlined_call_operand.vmem [shape: f32[1,128], index: 5, kind: input, shape index: {}]
  %s6 = inlined_call_operand.hbm [shape: f32[128,128], index: 6, kind: input, shape index: {}]
  %s7 = inlined_call_operand.vmem [shape: f32[1,128], index: 7, kind: input, shape index: {}]
  %s8 = inlined_call_operand.hbm [shape: f32[128,128], index: 8, kind: input, shape index: {}]
  %s9 = inlined_call_operand.vmem [shape: f32[1,128], index: 9, kind: input, shape index: {}]
  %s10 = inlined_call_operand.hbm [shape: f32[8,128], index: 10, kind: output, shape index: {}]
  %s11 = sld [smem:[#allocation0]]
  $region70: #{tpu_custom_call.1} parent=0
    _
  %s13 = ssub.s32 1, %s11
  %s14 = scalar_select 0, %s13, %s11
  %15 = sst [smem:[#allocation2]] %s0
  $region1: #{tpu_custom_call.1} parent=0
    #allocation3 [shape = 'u8[4096]{0}', space=vmem, size = 0x1000, scoped, tag = 'input window, operand 1, single buffered']
    #allocation4 [shape = 's32[1]{0}', space=sflag, size = 0x4, scoped, tag = 'scoped memory for tpu_custom_call.1']
    #allocation5 [shape = 's32[1]{0}', space=sflag, size = 0x4, scoped, tag = 'scoped memory for tpu_custom_call.1']
    #allocation6 [shape = 'u8[8192]{0}', space=vmem, size = 0x2000, scoped, tag = 'input window, operand 2, single buffered']
    #allocation7 [shape = 's32[1]{0}', space=sflag, size = 0x4, scoped, tag = 'scoped memory for tpu_custom_call.1']
    #allocation8 [shape = 'u8[131072]{0}', space=vmem, size = 0x20000, scoped, tag = 'input window, operand 4, single buffered']
    #allocation9 [shape = 'u8[65536]{0}', space=vmem, size = 0x10000, scoped, tag = 'input window, operand 6, single buffered']
    #allocation10 [shape = 's32[1]{0}', space=sflag, size = 0x4, scoped, tag = 'scoped memory for tpu_custom_call.1']
    #allocation11 [shape = 'u8[65536]{0}', space=vmem, size = 0x10000, scoped, tag = 'input window, operand 8, single buffered']
    #allocation12 [shape = 'u8[4096]{0}', space=vmem, size = 0x1000, scoped, tag = 'output window, operand 0, single buffered']
    %16 = vsyncpa [#allocation4], 0
    %17 = vsyncpa [#allocation7], 0
    %18 = vsyncpa [#allocation10], 0
    %19 = vsyncpa [#allocation5], 0
    // Predicated region
    $region2: #{tpu_custom_call.1} parent=1 // pred_check
      _
    $region3: #{tpu_custom_call.1} parent=1 // pred_check_branch
      %21 = sbr.rel (0) target = $region5
    $region4: #{tpu_custom_call.1} parent=1 // pred_region
      _
    $region5: #{tpu_custom_call.1} parent=1 // pred_fallthru
      _
    // Predicated region
    $region6: #{tpu_custom_call.1} parent=1 // pred_check
      _
    $region7: #{tpu_custom_call.1} parent=1 // pred_check_branch
      %23 = sbr.rel (0) target = $region9
    $region8: #{tpu_custom_call.1} parent=1 // pred_region
      %s25 = ssub.s32 128, 128
      %26 = vsyncadd [#allocation4], %s25
      %s28 = sshll.u32 [#allocation3], 4
      %s29 = int_to_ptr.vmem [resolvable:$true] %s28
      %31 = dma.hbm_to_vmem [thread:$0]  %s1, 128, %s29, [#allocation4]
    $region9: #{tpu_custom_call.1} parent=1 // pred_fallthru
      _
    // Predicated region
    $region10: #{tpu_custom_call.1} parent=1 // pred_check
      _
    $region11: #{tpu_custom_call.1} parent=1 // pred_check_branch
      %33 = sbr.rel (0) target = $region13
    $region12: #{tpu_custom_call.1} parent=1 // pred_region
      %s35 = ssub.s32 256, 256
      %36 = vsyncadd [#allocation7], %s35
      %s38 = sshll.u32 [#allocation6], 4
      %s39 = int_to_ptr.vmem [resolvable:$true] %s38
      %41 = dma.hbm_to_vmem [thread:$0]  %s2, 256, %s39, [#allocation7]
    $region13: #{tpu_custom_call.1} parent=1 // pred_fallthru
      _
    // Predicated region
    $region14: #{tpu_custom_call.1} parent=1 // pred_check
      _
    $region15: #{tpu_custom_call.1} parent=1 // pred_check_branch
      %43 = sbr.rel (0) target = $region17
    $region16: #{tpu_custom_call.1} parent=1 // pred_region
      _
    $region17: #{tpu_custom_call.1} parent=1 // pred_fallthru
      _
    // Predicated region
    $region18: #{tpu_custom_call.1} parent=1 // pred_check
      _
    $region19: #{tpu_custom_call.1} parent=1 // pred_check_branch
      %45 = sbr.rel (0) target = $region21
    $region20: #{tpu_custom_call.1} parent=1 // pred_region
      %s47 = ssub.s32 4096, 4096
      %48 = vsyncadd [#allocation7], %s47
      %s49 = sshll.u32 [#allocation8], 4
      %s50 = int_to_ptr.vmem [resolvable:$true] %s49
      %55 = dma.hbm_to_vmem [thread:$0]  %s4, 4096, %s50, [#allocation7], 128, 128, 8
    $region21: #{tpu_custom_call.1} parent=1 // pred_fallthru
      _
    // Predicated region
    $region22: #{tpu_custom_call.1} parent=1 // pred_check
      _
    $region23: #{tpu_custom_call.1} parent=1 // pred_check_branch
      %57 = sbr.rel (0) target = $region25
    $region24: #{tpu_custom_call.1} parent=1 // pred_region
      _
    $region25: #{tpu_custom_call.1} parent=1 // pred_fallthru
      _
    // Predicated region
    $region26: #{tpu_custom_call.1} parent=1 // pred_check
      _
    $region27: #{tpu_custom_call.1} parent=1 // pred_check_branch
      %59 = sbr.rel (0) target = $region29
    $region28: #{tpu_custom_call.1} parent=1 // pred_region
      %s61 = ssub.s32 2048, 2048
      %62 = vsyncadd [#allocation10], %s61
      %s63 = sshll.u32 [#allocation9], 4
      %s64 = int_to_ptr.vmem [resolvable:$true] %s63
      %69 = dma.hbm_to_vmem [thread:$0]  %s6, 2048, %s64, [#allocation10], 128, 128, 8
    $region29: #{tpu_custom_call.1} parent=1 // pred_fallthru
      _
    // Predicated region
    $region30: #{tpu_custom_call.1} parent=1 // pred_check
      _
    $region31: #{tpu_custom_call.1} parent=1 // pred_check_branch
      %71 = sbr.rel (0) target = $region33
    $region32: #{tpu_custom_call.1} parent=1 // pred_region
      _
    $region33: #{tpu_custom_call.1} parent=1 // pred_fallthru
      _
    // Predicated region
    $region34: #{tpu_custom_call.1} parent=1 // pred_check
      _
    $region35: #{tpu_custom_call.1} parent=1 // pred_check_branch
      %73 = sbr.rel (0) target = $region37
    $region36: #{tpu_custom_call.1} parent=1 // pred_region
      %s75 = ssub.s32 2048, 2048
      %76 = vsyncadd [#allocation10], %s75
      %s77 = sshll.u32 [#allocation11], 4
      %s78 = int_to_ptr.vmem [resolvable:$true] %s77
      %83 = dma.hbm_to_vmem [thread:$0]  %s8, 2048, %s78, [#allocation10], 128, 128, 8
    $region37: #{tpu_custom_call.1} parent=1 // pred_fallthru
      _
    // Predicated region
    $region38: #{tpu_custom_call.1} parent=1 // pred_check
      _
    $region39: #{tpu_custom_call.1} parent=1 // pred_check_branch
      %85 = sbr.rel (0) target = $region41
    $region40: #{tpu_custom_call.1} parent=1 // pred_region
      _
    $region41: #{tpu_custom_call.1} parent=1 // pred_fallthru
      _
    // Predicated region
    $region42: #{tpu_custom_call.1} parent=1 // pred_check
      _
    $region43: #{tpu_custom_call.1} parent=1 // pred_check_branch
      %87 = sbr.rel (0) target = $region45
    $region44: #{tpu_custom_call.1} parent=1 // pred_region
      %88 = dma.done [#allocation4], 128
    $region45: #{tpu_custom_call.1} parent=1 // pred_fallthru
      _
    // Predicated region
    $region46: #{tpu_custom_call.1} parent=1 // pred_check
      _
    $region47: #{tpu_custom_call.1} parent=1 // pred_check_branch
      %90 = sbr.rel (0) target = $region49
    $region48: #{tpu_custom_call.1} parent=1 // pred_region
      %91 = dma.done [#allocation7], 256
    $region49: #{tpu_custom_call.1} parent=1 // pred_fallthru
      _
    // Predicated region
    $region50: #{tpu_custom_call.1} parent=1 // pred_check
      _
    $region51: #{tpu_custom_call.1} parent=1 // pred_check_branch
      %93 = sbr.rel (0) target = $region53
    $region52: #{tpu_custom_call.1} parent=1 // pred_region
      %94 = dma.done [#allocation7], 4096
    $region53: #{tpu_custom_call.1} parent=1 // pred_fallthru
      _
    // Predicated region
    $region54: #{tpu_custom_call.1} parent=1 // pred_check
      _
    $region55: #{tpu_custom_call.1} parent=1 // pred_check_branch
      %96 = sbr.rel (0) target = $region57
    $region56: #{tpu_custom_call.1} parent=1 // pred_region
      %97 = dma.done [#allocation10], 2048
    $region57: #{tpu_custom_call.1} parent=1 // pred_fallthru
      _
    // Predicated region
    $region58: #{tpu_custom_call.1} parent=1 // pred_check
      _
    $region59: #{tpu_custom_call.1} parent=1 // pred_check_branch
      %99 = sbr.rel (0) target = $region61
    $region60: #{tpu_custom_call.1} parent=1 // pred_region
      %100 = dma.done [#allocation10], 2048
    $region61: #{tpu_custom_call.1} parent=1 // pred_fallthru
      _
    %s101 = sld [smem:[#allocation2]]
    %v102 = vld [vmem:[#allocation3] sm:$0xff]
    %v103 = vld [vmem:[#allocation6] sm:$0xff]
    %v104 = vld [vmem:[#allocation6 + $0x8] sm:$0xff]
    %v105 = vld [vmem:[%s3] sm:$0x3]
    %v107 = vlaneseq
    %v108 = vshrl.u32 %v107, 7
    %v109 = vsub.s32 0, %v108
    %v110 = vrot.slane %v105, %v109
    %v111 = vlaneseq
    %v112 = vshrl.u32 %v111, 7
    %v113 = vsub.s32 1, %v112
    %v114 = vrot.slane %v105, %v113
    %vm117 = vcmask 64512
    %v119 = vsel %vm117, %v102, 0
    %121 = vmatprep.subr.mxu0 0.0
    %122 = vmatpush1.msra.mxu0 0.0
    %123 = vmatprep.subr.mxu0 0.0
    %124 = vmatpush1.msra.mxu0 0.0
    %125 = vmatprep.subr.mxu0 0.0
    %126 = vmatpush1.msra.mxu0 0.0
    %127 = vmatprep.subr.mxu0 0.0
    %128 = vmatpush1.msra.mxu0 0.0
    %129 = vmatprep.subr.mxu0 0.0
    %130 = vmatpush1.msra.mxu0 0.0
    %131 = vmatprep.subr.mxu0 0.0
    %132 = vmatpush1.msra.mxu0 0.0
    %133 = vmatprep.subr.mxu0 0.0
    %134 = vmatpush1.msra.mxu0 0.0
    %135 = vmatprep.subr.mxu0 0.0
    %136 = vmatpush1.msra.mxu0 0.0
    %137 = vmatprep.subr.mxu0 0.0
    %138 = vmatpush1.msra.mxu0 0.0
    %139 = vmatprep.subr.mxu0 0.0
    %140 = vmatpush1.msra.mxu0 0.0
    %141 = vmatprep.subr.mxu0 0.0
    %142 = vmatpush1.msra.mxu0 0.0
    %143 = vmatprep.subr.mxu0 0.0
    %144 = vmatpush1.msra.mxu0 0.0
    %145 = vmatprep.subr.mxu0 0.0
    %146 = vmatpush1.msra.mxu0 0.0
    %147 = vmatprep.subr.mxu0 0.0
    %148 = vmatpush1.msra.mxu0 0.0
    %149 = vmatprep.subr.mxu0 0.0
    %150 = vmatpush1.msra.mxu0 0.0
    %151 = vmatprep.subr.mxu0 %v104
    %152 = vmatpush1.msra.mxu0 %v103
    %153 = vmatprep.subr.mxu0 0.0
    %154 = vmatpush2.msra.mxu0 0.0
    %155 = vmatprep.subr.mxu0 0.0
    %156 = vmatpush2.msra.mxu0 0.0
    %157 = vmatprep.subr.mxu0 0.0
    %158 = vmatpush2.msra.mxu0 0.0
    %159 = vmatprep.subr.mxu0 0.0
    %160 = vmatpush2.msra.mxu0 0.0
    %161 = vmatprep.subr.mxu0 0.0
    %162 = vmatpush2.msra.mxu0 0.0
    %163 = vmatprep.subr.mxu0 0.0
    %164 = vmatpush2.msra.mxu0 0.0
    %165 = vmatprep.subr.mxu0 0.0
    %166 = vmatpush2.msra.mxu0 0.0
    %167 = vmatprep.subr.mxu0 0.0
    %168 = vmatpush2.msra.mxu0 0.0
    %169 = vmatprep.subr.mxu0 0.0
    %170 = vmatpush2.msra.mxu0 0.0
    %171 = vmatprep.subr.mxu0 0.0
    %172 = vmatpush2.msra.mxu0 0.0
    %173 = vmatprep.subr.mxu0 0.0
    %174 = vmatpush2.msra.mxu0 0.0
    %175 = vmatprep.subr.mxu0 0.0
    %176 = vmatpush2.msra.mxu0 0.0
    %177 = vmatprep.subr.mxu0 0.0
    %178 = vmatpush2.msra.mxu0 0.0
    %179 = vmatprep.subr.mxu0 0.0
    %180 = vmatpush2.msra.mxu0 0.0
    %181 = vmatprep.subr.mxu0 0.0
    %182 = vmatpush2.msra.mxu0 0.0
    %183 = vmatprep.subr.mxu0 0.0
    %184 = vmatpush2.msra.mxu0 0.0
    %185 = vmatprep.mubr.f32.mxu0 0.0
    %186 = vmatmul.mubr.f32.gmra.mxu0 %v119
    %v187 = vpop.f32.mrf.mxu0
    %v188 = vadd.f32 %v110, %v187
    %v189 = vpop.f32.mrf.mxu0
    %v190 = vadd.f32 %v114, %v189
    %191 = vdwg.mxu0
    %v192 = vmax.f32 %v188, 0.0
    %v193 = vmax.f32 %v190, 0.0
    %v194 = vld [vmem:[#allocation8] sm:$0xff]
    %v195 = vld [vmem:[#allocation8 + $0x8] sm:$0xff]
    %v196 = vld [vmem:[#allocation8 + $0x10] sm:$0xff]
    %v197 = vld [vmem:[#allocation8 + $0x18] sm:$0xff]
    %v198 = vld [vmem:[#allocation8 + $0x20] sm:$0xff]
    %v199 = vld [vmem:[#allocation8 + $0x28] sm:$0xff]
    %v200 = vld [vmem:[#allocation8 + $0x30] sm:$0xff]
    %v201 = vld [vmem:[#allocation8 + $0x38] sm:$0xff]
    %v202 = vld [vmem:[#allocation8 + $0x40] sm:$0xff]
    %v203 = vld [vmem:[#allocation8 + $0x48] sm:$0xff]
    %v204 = vld [vmem:[#allocation8 + $0x50] sm:$0xff]
    %v205 = vld [vmem:[#allocation8 + $0x58] sm:$0xff]
    %v206 = vld [vmem:[#allocation8 + $0x60] sm:$0xff]
    %v207 = vld [vmem:[#allocation8 + $0x68] sm:$0xff]
    %v208 = vld [vmem:[#allocation8 + $0x70] sm:$0xff]
    %v209 = vld [vmem:[#allocation8 + $0x78] sm:$0xff]
    %v210 = vld [vmem:[#allocation8 + $0x80] sm:$0xff]
    %v211 = vld [vmem:[#allocation8 + $0x88] sm:$0xff]
    %v212 = vld [vmem:[#allocation8 + $0x90] sm:$0xff]
    %v213 = vld [vmem:[#allocation8 + $0x98] sm:$0xff]
    %v214 = vld [vmem:[#allocation8 + $0xa0] sm:$0xff]
    %v215 = vld [vmem:[#allocation8 + $0xa8] sm:$0xff]
    %v216 = vld [vmem:[#allocation8 + $0xb0] sm:$0xff]
    %v217 = vld [vmem:[#allocation8 + $0xb8] sm:$0xff]
    %v218 = vld [vmem:[#allocation8 + $0xc0] sm:$0xff]
    %v219 = vld [vmem:[#allocation8 + $0xc8] sm:$0xff]
    %v220 = vld [vmem:[#allocation8 + $0xd0] sm:$0xff]
    %v221 = vld [vmem:[#allocation8 + $0xd8] sm:$0xff]
    %v222 = vld [vmem:[#allocation8 + $0xe0] sm:$0xff]
    %v223 = vld [vmem:[#allocation8 + $0xe8] sm:$0xff]
    %v224 = vld [vmem:[#allocation8 + $0xf0] sm:$0xff]
    %v225 = vld [vmem:[#allocation8 + $0xf8] sm:$0xff]
    %v226 = vld [vmem:[%s5] sm:$0x1]
    %v228 = vlaneseq
    %v229 = vshrl.u32 %v228, 7
    %v230 = vsub.s32 0, %v229
    %v231 = vrot.slane %v226, %v230
    %233 = vmatprep.subr.mxu0 0.0
    %234 = vmatpush1.msra.mxu0 %v209
    %235 = vmatprep.subr.mxu0 0.0
    %236 = vmatpush1.msra.mxu0 %v208
    %237 = vmatprep.subr.mxu0 0.0
    %238 = vmatpush1.msra.mxu0 %v207
    %239 = vmatprep.subr.mxu0 0.0
    %240 = vmatpush1.msra.mxu0 %v206
    %241 = vmatprep.subr.mxu0 0.0
    %242 = vmatpush1.msra.mxu0 %v205
    %243 = vmatprep.subr.mxu0 0.0
    %244 = vmatpush1.msra.mxu0 %v204
    %245 = vmatprep.subr.mxu0 0.0
    %246 = vmatpush1.msra.mxu0 %v203
    %247 = vmatprep.subr.mxu0 0.0
    %248 = vmatpush1.msra.mxu0 %v202
    %249 = vmatprep.subr.mxu0 0.0
    %250 = vmatpush1.msra.mxu0 %v201
    %251 = vmatprep.subr.mxu0 0.0
    %252 = vmatpush1.msra.mxu0 %v200
    %253 = vmatprep.subr.mxu0 0.0
    %254 = vmatpush1.msra.mxu0 %v199
    %255 = vmatprep.subr.mxu0 0.0
    %256 = vmatpush1.msra.mxu0 %v198
    %257 = vmatprep.subr.mxu0 0.0
    %258 = vmatpush1.msra.mxu0 %v197
    %259 = vmatprep.subr.mxu0 0.0
    %260 = vmatpush1.msra.mxu0 %v196
    %261 = vmatprep.subr.mxu0 0.0
    %262 = vmatpush1.msra.mxu0 %v195
    %263 = vmatprep.subr.mxu0 0.0
    %264 = vmatpush1.msra.mxu0 %v194
    %265 = vmatprep.subr.mxu0 0.0
    %266 = vmatpush2.msra.mxu0 %v225
    %267 = vmatprep.subr.mxu0 0.0
    %268 = vmatpush2.msra.mxu0 %v224
    %269 = vmatprep.subr.mxu0 0.0
    %270 = vmatpush2.msra.mxu0 %v223
    %271 = vmatprep.subr.mxu0 0.0
    %272 = vmatpush2.msra.mxu0 %v222
    %273 = vmatprep.subr.mxu0 0.0
    %274 = vmatpush2.msra.mxu0 %v221
    %275 = vmatprep.subr.mxu0 0.0
    %276 = vmatpush2.msra.mxu0 %v220
    %277 = vmatprep.subr.mxu0 0.0
    %278 = vmatpush2.msra.mxu0 %v219
    %279 = vmatprep.subr.mxu0 0.0
    %280 = vmatpush2.msra.mxu0 %v218
    %281 = vmatprep.subr.mxu0 0.0
    %282 = vmatpush2.msra.mxu0 %v217
    %283 = vmatprep.subr.mxu0 0.0
    %284 = vmatpush2.msra.mxu0 %v216
    %285 = vmatprep.subr.mxu0 0.0
    %286 = vmatpush2.msra.mxu0 %v215
    %287 = vmatprep.subr.mxu0 0.0
    %288 = vmatpush2.msra.mxu0 %v214
    %289 = vmatprep.subr.mxu0 0.0
    %290 = vmatpush2.msra.mxu0 %v213
    %291 = vmatprep.subr.mxu0 0.0
    %292 = vmatpush2.msra.mxu0 %v212
    %293 = vmatprep.subr.mxu0 0.0
    %294 = vmatpush2.msra.mxu0 %v211
    %295 = vmatprep.subr.mxu0 0.0
    %296 = vmatpush2.msra.mxu0 %v210
    %297 = vmatprep.mubr.f32.mxu0 %v193
    %298 = vmatmul.mubr.f32.gmra.mxu0 %v192
    %v299 = vpop.f32.mrf.mxu0
    %v300 = vadd.f32 %v231, %v299
    %v301 = vpop.f32.mrf.mxu0
    %302 = vdwg.mxu0
    %v303 = vmax.f32 %v300, 0.0
    %v304 = vld [vmem:[#allocation9] sm:$0xff]
    %v305 = vld [vmem:[#allocation9 + $0x8] sm:$0xff]
    %v306 = vld [vmem:[#allocation9 + $0x10] sm:$0xff]
    %v307 = vld [vmem:[#allocation9 + $0x18] sm:$0xff]
    %v308 = vld [vmem:[#allocation9 + $0x20] sm:$0xff]
    %v309 = vld [vmem:[#allocation9 + $0x28] sm:$0xff]
    %v310 = vld [vmem:[#allocation9 + $0x30] sm:$0xff]
    %v311 = vld [vmem:[#allocation9 + $0x38] sm:$0xff]
    %v312 = vld [vmem:[#allocation9 + $0x40] sm:$0xff]
    %v313 = vld [vmem:[#allocation9 + $0x48] sm:$0xff]
    %v314 = vld [vmem:[#allocation9 + $0x50] sm:$0xff]
    %v315 = vld [vmem:[#allocation9 + $0x58] sm:$0xff]
    %v316 = vld [vmem:[#allocation9 + $0x60] sm:$0xff]
    %v317 = vld [vmem:[#allocation9 + $0x68] sm:$0xff]
    %v318 = vld [vmem:[#allocation9 + $0x70] sm:$0xff]
    %v319 = vld [vmem:[#allocation9 + $0x78] sm:$0xff]
    %v320 = vld [vmem:[%s7] sm:$0x1]
    %v322 = vlaneseq
    %v323 = vshrl.u32 %v322, 7
    %v324 = vsub.s32 0, %v323
    %v325 = vrot.slane %v320, %v324
    %327 = vmatprep.subr.mxu0 0.0
    %328 = vmatpush1.msra.mxu0 %v319
    %329 = vmatprep.subr.mxu0 0.0
    %330 = vmatpush1.msra.mxu0 %v318
    %331 = vmatprep.subr.mxu0 0.0
    %332 = vmatpush1.msra.mxu0 %v317
    %333 = vmatprep.subr.mxu0 0.0
    %334 = vmatpush1.msra.mxu0 %v316
    %335 = vmatprep.subr.mxu0 0.0
    %336 = vmatpush1.msra.mxu0 %v315
    %337 = vmatprep.subr.mxu0 0.0
    %338 = vmatpush1.msra.mxu0 %v314
    %339 = vmatprep.subr.mxu0 0.0
    %340 = vmatpush1.msra.mxu0 %v313
    %341 = vmatprep.subr.mxu0 0.0
    %342 = vmatpush1.msra.mxu0 %v312
    %343 = vmatprep.subr.mxu0 0.0
    %344 = vmatpush1.msra.mxu0 %v311
    %345 = vmatprep.subr.mxu0 0.0
    %346 = vmatpush1.msra.mxu0 %v310
    %347 = vmatprep.subr.mxu0 0.0
    %348 = vmatpush1.msra.mxu0 %v309
    %349 = vmatprep.subr.mxu0 0.0
    %350 = vmatpush1.msra.mxu0 %v308
    %351 = vmatprep.subr.mxu0 0.0
    %352 = vmatpush1.msra.mxu0 %v307
    %353 = vmatprep.subr.mxu0 0.0
    %354 = vmatpush1.msra.mxu0 %v306
    %355 = vmatprep.subr.mxu0 0.0
    %356 = vmatpush1.msra.mxu0 %v305
    %357 = vmatprep.subr.mxu0 0.0
    %358 = vmatpush1.msra.mxu0 %v304
    %359 = vmatprep.subr.mxu0 0.0
    %360 = vmatpush2.msra.mxu0 0.0
    %361 = vmatprep.subr.mxu0 0.0
    %362 = vmatpush2.msra.mxu0 0.0
    %363 = vmatprep.subr.mxu0 0.0
    %364 = vmatpush2.msra.mxu0 0.0
    %365 = vmatprep.subr.mxu0 0.0
    %366 = vmatpush2.msra.mxu0 0.0
    %367 = vmatprep.subr.mxu0 0.0
    %368 = vmatpush2.msra.mxu0 0.0
    %369 = vmatprep.subr.mxu0 0.0
    %370 = vmatpush2.msra.mxu0 0.0
    %371 = vmatprep.subr.mxu0 0.0
    %372 = vmatpush2.msra.mxu0 0.0
    %373 = vmatprep.subr.mxu0 0.0
    %374 = vmatpush2.msra.mxu0 0.0
    %375 = vmatprep.subr.mxu0 0.0
    %376 = vmatpush2.msra.mxu0 0.0
    %377 = vmatprep.subr.mxu0 0.0
    %378 = vmatpush2.msra.mxu0 0.0
    %379 = vmatprep.subr.mxu0 0.0
    %380 = vmatpush2.msra.mxu0 0.0
    %381 = vmatprep.subr.mxu0 0.0
    %382 = vmatpush2.msra.mxu0 0.0
    %383 = vmatprep.subr.mxu0 0.0
    %384 = vmatpush2.msra.mxu0 0.0
    %385 = vmatprep.subr.mxu0 0.0
    %386 = vmatpush2.msra.mxu0 0.0
    %387 = vmatprep.subr.mxu0 0.0
    %388 = vmatpush2.msra.mxu0 0.0
    %389 = vmatprep.subr.mxu0 0.0
    %390 = vmatpush2.msra.mxu0 0.0
    %391 = vmatprep.mubr.f32.mxu0 0.0
    %392 = vmatmul.mubr.f32.gmra.mxu0 %v303
    %v393 = vpop.f32.mrf.mxu0
    %v394 = vadd.f32 %v325, %v393
    %v395 = vpop.f32.mrf.mxu0
    %396 = vdwg.mxu0
    %v397 = vmax.f32 %v394, 0.0
    %v398 = vld [vmem:[#allocation11] sm:$0xff]
    %v399 = vld [vmem:[#allocation11 + $0x8] sm:$0xff]
    %v400 = vld [vmem:[#allocation11 + $0x10] sm:$0xff]
    %v401 = vld [vmem:[#allocation11 + $0x18] sm:$0xff]
    %v402 = vld [vmem:[#allocation11 + $0x20] sm:$0xff]
    %v403 = vld [vmem:[#allocation11 + $0x28] sm:$0xff]
    %v404 = vld [vmem:[#allocation11 + $0x30] sm:$0xff]
    %v405 = vld [vmem:[#allocation11 + $0x38] sm:$0xff]
    %v406 = vld [vmem:[#allocation11 + $0x40] sm:$0xff]
    %v407 = vld [vmem:[#allocation11 + $0x48] sm:$0xff]
    %v408 = vld [vmem:[#allocation11 + $0x50] sm:$0xff]
    %v409 = vld [vmem:[#allocation11 + $0x58] sm:$0xff]
    %v410 = vld [vmem:[#allocation11 + $0x60] sm:$0xff]
    %v411 = vld [vmem:[#allocation11 + $0x68] sm:$0xff]
    %v412 = vld [vmem:[#allocation11 + $0x70] sm:$0xff]
    %v413 = vld [vmem:[#allocation11 + $0x78] sm:$0xff]
    %v414 = vld [vmem:[%s9] sm:$0x1]
    %v416 = vlaneseq
    %v417 = vshrl.u32 %v416, 7
    %v418 = vsub.s32 0, %v417
    %v419 = vrot.slane %v414, %v418
    %421 = vmatprep.subr.mxu0 0.0
    %422 = vmatpush1.msra.mxu0 %v413
    %423 = vmatprep.subr.mxu0 0.0
    %424 = vmatpush1.msra.mxu0 %v412
    %425 = vmatprep.subr.mxu0 0.0
    %426 = vmatpush1.msra.mxu0 %v411
    %427 = vmatprep.subr.mxu0 0.0
    %428 = vmatpush1.msra.mxu0 %v410
    %429 = vmatprep.subr.mxu0 0.0
    %430 = vmatpush1.msra.mxu0 %v409
    %431 = vmatprep.subr.mxu0 0.0
    %432 = vmatpush1.msra.mxu0 %v408
    %433 = vmatprep.subr.mxu0 0.0
    %434 = vmatpush1.msra.mxu0 %v407
    %435 = vmatprep.subr.mxu0 0.0
    %436 = vmatpush1.msra.mxu0 %v406
    %437 = vmatprep.subr.mxu0 0.0
    %438 = vmatpush1.msra.mxu0 %v405
    %439 = vmatprep.subr.mxu0 0.0
    %440 = vmatpush1.msra.mxu0 %v404
    %441 = vmatprep.subr.mxu0 0.0
    %442 = vmatpush1.msra.mxu0 %v403
    %443 = vmatprep.subr.mxu0 0.0
    %444 = vmatpush1.msra.mxu0 %v402
    %445 = vmatprep.subr.mxu0 0.0
    %446 = vmatpush1.msra.mxu0 %v401
    %447 = vmatprep.subr.mxu0 0.0
    %448 = vmatpush1.msra.mxu0 %v400
    %449 = vmatprep.subr.mxu0 0.0
    %450 = vmatpush1.msra.mxu0 %v399
    %451 = vmatprep.subr.mxu0 0.0
    %452 = vmatpush1.msra.mxu0 %v398
    %453 = vmatprep.subr.mxu0 0.0
    %454 = vmatpush2.msra.mxu0 0.0
    %455 = vmatprep.subr.mxu0 0.0
    %456 = vmatpush2.msra.mxu0 0.0
    %457 = vmatprep.subr.mxu0 0.0
    %458 = vmatpush2.msra.mxu0 0.0
    %459 = vmatprep.subr.mxu0 0.0
    %460 = vmatpush2.msra.mxu0 0.0
    %461 = vmatprep.subr.mxu0 0.0
    %462 = vmatpush2.msra.mxu0 0.0
    %463 = vmatprep.subr.mxu0 0.0
    %464 = vmatpush2.msra.mxu0 0.0
    %465 = vmatprep.subr.mxu0 0.0
    %466 = vmatpush2.msra.mxu0 0.0
    %467 = vmatprep.subr.mxu0 0.0
    %468 = vmatpush2.msra.mxu0 0.0
    %469 = vmatprep.subr.mxu0 0.0
    %470 = vmatpush2.msra.mxu0 0.0
    %471 = vmatprep.subr.mxu0 0.0
    %472 = vmatpush2.msra.mxu0 0.0
    %473 = vmatprep.subr.mxu0 0.0
    %474 = vmatpush2.msra.mxu0 0.0
    %475 = vmatprep.subr.mxu0 0.0
    %476 = vmatpush2.msra.mxu0 0.0
    %477 = vmatprep.subr.mxu0 0.0
    %478 = vmatpush2.msra.mxu0 0.0
    %479 = vmatprep.subr.mxu0 0.0
    %480 = vmatpush2.msra.mxu0 0.0
    %481 = vmatprep.subr.mxu0 0.0
    %482 = vmatpush2.msra.mxu0 0.0
    %483 = vmatprep.subr.mxu0 0.0
    %484 = vmatpush2.msra.mxu0 0.0
    %485 = vmatprep.mubr.f32.mxu0 0.0
    %486 = vmatmul.mubr.f32.gmra.mxu0 %v397
    %v487 = vpop.f32.mrf.mxu0
    %v488 = vadd.f32 %v419, %v487
    %v489 = vpop.f32.mrf.mxu0
    %490 = vdwg.mxu0
    %v491 = vxor.u32 %v488, 2147483648
    %v492 = vmul.f32 %v491, 1.442695
    %v493 = vpow.pop %v492
    %v494 = vadd.f32 %v493, 1.0
    %v495 = vrcp.pop %v494
    %v496 = vmul.f32 1.0, %v495
    %v497 = vstv %s101
    %v498 = vmul.f32 %v496, %v497
    %499 = vst [vmem:[#allocation12] sm:$0xff] %v498
    // Predicated region
    $region62: #{tpu_custom_call.1} parent=1 // pred_check
      _
    $region63: #{tpu_custom_call.1} parent=1 // pred_check_branch
      %501 = sbr.rel (0) target = $region65
    $region64: #{tpu_custom_call.1} parent=1 // pred_region
      %s503 = ssub.s32 128, 128
      %504 = vsyncadd [#allocation5], %s503
      %s506 = sshll.u32 [#allocation12], 4
      %s507 = int_to_ptr.vmem [resolvable:$true] %s506
      %509 = dma.vmem_to_hbm [thread:$0]  %s507, 128, %s10, [#allocation5]
    $region65: #{tpu_custom_call.1} parent=1 // pred_fallthru
      _
    // Predicated region
    $region66: #{tpu_custom_call.1} parent=1 // pred_check
      _
    $region67: #{tpu_custom_call.1} parent=1 // pred_check_branch
      %511 = sbr.rel (0) target = $region69
    $region68: #{tpu_custom_call.1} parent=1 // pred_region
      %512 = dma.done [#allocation5], 128
    $region69: #{tpu_custom_call.1} parent=1 // pred_fallthru
      _
    %513 = vsyncpa [#allocation4], 1
    %514 = vsyncpa [#allocation7], 1
    %515 = vsyncpa [#allocation10], 1
    %516 = vsyncpa [#allocation5], 1

</llo_original>
